<compile_context>
chip_gen: v7x
topology: tpu7x:2x2x1
jax: 0.10.0
libtpu: 0.0.40
codegen_flags: <defaults>
</compile_context>

<pallas_src>
import functools

import jax
import jax.numpy as jnp
from jax import lax
from jax.experimental import pallas as pl
from jax.experimental.pallas import tpu as pltpu

TEMPERATURE = 0.05
MARGIN_TTM = 5.0
EPS = 1e-8
BIG = 10000.0
NEG_INIT = -1.0e30  # safe "minus infinity" for the running column max


def _nce_kernel(v_ref, t_hbm, tmsk_hbm, trec_hbm,            # inputs
                nce_ref, rank_ref,                           # outputs
                txt_n, col_m, col_s, lv_acc, ds_acc, rk_acc,  # VMEM scratch
                dma_sem):                                    # DMA semaphores
    i = pl.program_id(0)
    n_tiles = pl.num_programs(0)
    tile_m, _ = v_ref.shape
    bsz = txt_n.shape[0] // 3
    inv_t = 1.0 / TEMPERATURE

    @pl.when(i == 0)
    def _init():
        # Pull the three text embeddings from HBM once, stacked as (3B, D),
        # then cosine-normalize them in place (done once, not per row tile).
        cp0 = pltpu.make_async_copy(t_hbm, txt_n.at[0:bsz], dma_sem.at[0])
        cp1 = pltpu.make_async_copy(tmsk_hbm, txt_n.at[bsz:2 * bsz], dma_sem.at[1])
        cp2 = pltpu.make_async_copy(trec_hbm, txt_n.at[2 * bsz:3 * bsz], dma_sem.at[2])
        cp0.start(); cp1.start(); cp2.start()
        cp0.wait(); cp1.wait(); cp2.wait()
        txt = txt_n[...]
        ss = jnp.sum(txt * txt, axis=-1, keepdims=True)
        # rsqrt+mul instead of sqrt+max+div; equivalent to x / max(||x||, eps)
        # because EPS**2 = 1e-16 is representable in f32.
        txt_n[...] = txt * lax.rsqrt(jnp.maximum(ss, EPS * EPS))
        col_m[...] = jnp.full(col_m.shape, NEG_INIT, jnp.float32)
        col_s[...] = jnp.zeros(col_s.shape, jnp.float32)
        lv_acc[...] = jnp.zeros(lv_acc.shape, jnp.float32)
        ds_acc[...] = jnp.zeros(ds_acc.shape, jnp.float32)
        rk_acc[...] = jnp.zeros(rk_acc.shape, jnp.float32)

    # Cosine-normalize this tile of video rows (f32, per @force_fp32).
    v = v_ref[...]
    vss = jnp.sum(v * v, axis=-1, keepdims=True)
    v = v * lax.rsqrt(jnp.maximum(vss, EPS * EPS))

    # Single fused (tile_m, 3B) similarity; contract feature dim of BOTH
    # operands directly — no transposed operand is materialized.
    # NOTE: kept f32 (not bf16) to stay within the @force_fp32 tolerance.
    txt = txt_n[...]
    sim = lax.dot_general(v, txt, (((1,), (1,)), ((), ())),
                          preferred_element_type=jnp.float32) * inv_t

    # Diagonals straight from the embeddings (no eye mask, no MXU dependency).
    row0 = pl.multiple_of(i * tile_m, tile_m)
    t_tile = txt_n[pl.ds(row0, tile_m), :]
    tm_tile = txt_n[pl.ds(bsz + row0, tile_m), :]
    tr_tile = txt_n[pl.ds(2 * bsz + row0, tile_m), :]
    vt_d = jnp.sum(v * t_tile, axis=-1, keepdims=True) * inv_t
    vtm_d = jnp.sum(v * tm_tile, axis=-1, keepdims=True) * inv_t
    vtr_d = jnp.sum(v * tr_tile, axis=-1, keepdims=True) * inv_t

    # ---- v2t path: shared UNMASKED row max + single exp pass -------------
    # The reference sets masked diagonals to sim_ii - (sim_ii + 1e4) = -1e4,
    # whose exp underflows to exactly 0 in f32, so subtracting exp(diag - m)
    # from the block sums reproduces the masked logsumexp exactly.  The
    # unmasked max m >= every masked row max, so all exp args are <= 0 and
    # the LSE stays stable.  Do not change the masking scheme without
    # revisiting this decomposition.
    m = jnp.max(sim, axis=1, keepdims=True)                     # (tile_m, 1)
    e = jnp.exp(sim - m)                                        # (tile_m, 3B)
    s_vt = jnp.sum(e[:, 0:bsz], axis=1, keepdims=True)
    s_vtm = jnp.sum(e[:, bsz:2 * bsz], axis=1, keepdims=True)
    s_vtr = jnp.sum(e[:, 2 * bsz:3 * bsz], axis=1, keepdims=True)
    ed_vt = jnp.exp(vt_d - m)
    ed_vtm = jnp.exp(vtm_d - m)
    ed_vtr = jnp.exp(vtr_d - m)
    lse_vt = m + jnp.log(s_vt + (s_vtm - ed_vtm) + (s_vtr - ed_vtr))
    lse_vtm = m + jnp.log((s_vt - ed_vt) + s_vtm + (s_vtr - ed_vtr))
    lse_vtr = m + jnp.log((s_vt - ed_vt) + (s_vtm - ed_vtm) + s_vtr)

    row_term = (vt_d - lse_vt) + (vtm_d - lse_vtm) + (vtr_d - lse_vtr)
    lv_acc[...] += jnp.sum(row_term, axis=0, keepdims=True)
    ds_acc[...] += jnp.sum(vt_d + vtm_d + vtr_d, axis=0, keepdims=True)
    # MarginRankingLoss(margin_ttm)(vt_diag, vtm_diag, y=1) numerator.
    rk_acc[...] += jnp.sum(jnp.maximum(MARGIN_TTM - (vt_d - vtm_d), 0.0),
                           axis=0, keepdims=True)

    # ---- t2v path: online per-column logsumexp across row tiles ----------
    tile_cm = jnp.max(sim, axis=0, keepdims=True)               # (1, 3B)
    new_m = jnp.maximum(col_m[...], tile_cm)
    col_s[...] = (col_s[...] * jnp.exp(col_m[...] - new_m)
                  + jnp.sum(jnp.exp(sim - new_m), axis=0, keepdims=True))
    col_m[...] = new_m

    @pl.when(i == n_tiles - 1)
    def _finalize():
        lse_col = col_m[...] + jnp.log(col_s[...])              # (1, 3B)
        sum_lse = jnp.sum(lse_col, axis=1, keepdims=True)       # (1, 1)
        loss_v = -lv_acc[...] / bsz
        loss_t = -(ds_acc[...] - sum_lse) / (3.0 * bsz)
        nce_ref[...] = loss_v + loss_t
        rank_ref[...] = rk_acc[...] / bsz


def _pick_row_tile(bsz):
    for t in (512, 256, 128, 64, 32, 16, 8):
        if bsz % t == 0:
            return t
    return bsz  # tiny / odd batch: single full-array block


@functools.partial(jax.jit, static_argnames=("use_rank",))
def exclusive_nce_with_ranking_loss(video_embd, text_embd, text_mask_embd,
                                    text_recon_embd, use_rank=False):
    # @force_fp32: run the loss math in f32 regardless of the input dtype.
    v = video_embd.astype(jnp.float32)
    t = text_embd.astype(jnp.float32)
    tmsk = text_mask_embd.astype(jnp.float32)
    trec = text_recon_embd.astype(jnp.float32)

    bsz, dim = v.shape
    tile_m = _pick_row_tile(bsz)
    n_tiles = bsz // tile_m

    # VMEM budget: normalized texts + double-buffered v tile + (tile_m, 3B)
    # sim / exp temporaries.  Capped at 60 MiB so it also fits v7x's 64 MiB.
    need = 4 * (3 * bsz * dim + 2 * tile_m * dim + 8 * tile_m * 3 * bsz
                + 4 * 3 * bsz) + (1 << 20)
    vmem_limit = int(min(60 * 2 ** 20, max(32 * 2 ** 20, 2 * need)))

    nce, rank = pl.pallas_call(
        _nce_kernel,
        out_shape=(jax.ShapeDtypeStruct((1, 1), jnp.float32),
                   jax.ShapeDtypeStruct((1, 1), jnp.float32)),
        grid=(n_tiles,),
        in_specs=[
            pl.BlockSpec((tile_m, dim), lambda i: (i, 0)),  # video rows: tiled
            pl.BlockSpec(memory_space=pl.ANY),              # text embeddings
            pl.BlockSpec(memory_space=pl.ANY),              # text-mask embeddings
            pl.BlockSpec(memory_space=pl.ANY),              # text-recon embeddings
        ],
        out_specs=(pl.BlockSpec((1, 1), lambda i: (0, 0)),
                   pl.BlockSpec((1, 1), lambda i: (0, 0))),
        scratch_shapes=[
            pltpu.VMEM((3 * bsz, dim), jnp.float32),  # normalized texts
            pltpu.VMEM((1, 3 * bsz), jnp.float32),    # running column max
            pltpu.VMEM((1, 3 * bsz), jnp.float32),    # running column sum-exp
            pltpu.VMEM((1, 1), jnp.float32),          # loss_v accumulator
            pltpu.VMEM((1, 1), jnp.float32),          # diag-sum accumulator
            pltpu.VMEM((1, 1), jnp.float32),          # rank accumulator
            pltpu.SemaphoreType.DMA((3,)),            # text-load DMAs
        ],
        # The row-tile axis carries accumulators -> must stay "arbitrary".
        # A v7x megacore split would need per-core partials + a combine pass.
        compiler_params=pltpu.CompilerParams(
            dimension_semantics=("arbitrary",),
            vmem_limit_bytes=vmem_limit),
    )(v, t, tmsk, trec)

    losses = {"nce_loss": nce[0, 0]}
    if use_rank:
        # use_rank_ttm=True by default in the module
        losses["rank_t_tm_loss"] = rank[0, 0]
    return losses


def _reference(v, t, tm_, tr):
    """Pure-JAX transcription of the PyTorch forward (default flags)."""
    def cn(a):
        n = jnp.linalg.norm(a, axis=-1)[:, None]
        return a / jnp.maximum(n, EPS)

    vn, tn, tmn, trn = cn(v), cn(t), cn(tm_), cn(tr)
    sim_vt = vn @ tn.T / TEMPERATURE
    sim_vtm = vn @ tmn.T / TEMPERATURE
    sim_vtr = vn @ trn.T / TEMPERATURE
    bsz = sim_vt.shape[0]
    vt_d, vtm_d, vtr_d = jnp.diag(sim_vt), jnp.diag(sim_vtm), jnp.diag(sim_vtr)

    v2t_forvt = jnp.concatenate(
        [sim_vt, sim_vtm - jnp.diag(vtm_d + BIG), sim_vtr - jnp.diag(vtr_d + BIG)], axis=1)
    v2t_forvtm = jnp.concatenate(
        [sim_vt - jnp.diag(vt_d + BIG), sim_vtm, sim_vtr - jnp.diag(vtr_d + BIG)], axis=1)
    v2t_forvtr = jnp.concatenate(
        [sim_vt - jnp.diag(vt_d + BIG), sim_vtm - jnp.diag(vtm_d + BIG), sim_vtr], axis=1)

    vt_ls = jax.nn.log_softmax(v2t_forvt, axis=1)[:, :bsz]
    vtm_ls = jax.nn.log_softmax(v2t_forvtm, axis=1)[:, bsz:2 * bsz]
    vtr_ls = jax.nn.log_softmax(v2t_forvtr, axis=1)[:, 2 * bsz:3 * bsz]
    vtall = jnp.diag(vt_ls) + jnp.diag(vtm_ls) + jnp.diag(vtr_ls)
    loss_v = -(jnp.sum(vtall) / bsz)

    t2v = jnp.concatenate([sim_vt, sim_vtm, sim_vtr], axis=1).T
    t2v_ls = jax.nn.log_softmax(t2v, axis=1).reshape(-1, bsz, bsz)
    t2v_diag = jnp.diagonal(t2v_ls, axis1=1, axis2=2)
    loss_t = -jnp.mean(jnp.mean(t2v_diag, axis=1))

    rank = jnp.mean(jnp.maximum(-(vt_d - vtm_d) + MARGIN_TTM, 0.0))
    return loss_v + loss_t, rank


if __name__ == "__main__":
    key = jax.random.PRNGKey(0)
    k1, k2, k3, k4 = jax.random.split(key, 4)
    B, D = 8, 128  # small synthetic shapes: batch=8, embedding dim=128

    video_embd = jax.random.normal(k1, (B, D), dtype=jnp.float32)
    text_embd = jax.random.normal(k2, (B, D), dtype=jnp.float32)
    text_mask_embd = jax.random.normal(k3, (B, D), dtype=jnp.float32)
    text_recon_embd = jax.random.normal(k4, (B, D), dtype=jnp.float32)

    losses = exclusive_nce_with_ranking_loss(
        video_embd, text_embd, text_mask_embd, text_recon_embd, use_rank=True)
    jax.block_until_ready(losses)

    ref_nce, ref_rank = _reference(video_embd, text_embd,
                                   text_mask_embd, text_recon_embd)
    assert jnp.allclose(losses["nce_loss"], ref_nce, atol=1e-4, rtol=1e-4), (
        losses["nce_loss"], ref_nce)
    assert jnp.allclose(losses["rank_t_tm_loss"], ref_rank, atol=1e-4, rtol=1e-4), (
        losses["rank_t_tm_loss"], ref_rank)

    print("KERNEL_OK")
</pallas_src>

<mosaic_0001>
module attributes {stable_mosaic.version = 11 : i64} {
  func.func @_nce_kernel(%arg0: i32, %arg1: memref<8x128xf32, #tpu.memory_space<vmem>>, %arg2: memref<8x128xf32, #tpu.memory_space<any>>, %arg3: memref<8x128xf32, #tpu.memory_space<any>>, %arg4: memref<8x128xf32, #tpu.memory_space<any>>, %arg5: memref<1x1xf32, #tpu.memory_space<vmem>>, %arg6: memref<1x1xf32, #tpu.memory_space<vmem>>, %arg7: memref<24x128xf32, #tpu.memory_space<vmem>>, %arg8: memref<1x24xf32, #tpu.memory_space<vmem>>, %arg9: memref<1x24xf32, #tpu.memory_space<vmem>>, %arg10: memref<1x1xf32, #tpu.memory_space<vmem>>, %arg11: memref<1x1xf32, #tpu.memory_space<vmem>>, %arg12: memref<1x1xf32, #tpu.memory_space<vmem>>, %arg13: memref<3x!tpu.dma_semaphore, #tpu.memory_space<semaphore_mem>>) attributes {dimension_semantics = [#tpu.dimension_semantics<arbitrary>], iteration_bounds = array<i64: 1>, scalar_prefetch = 0 : i64, scratch_operands = 7 : i64, tpu.core_type = #tpu.core_type<tc>, window_params = [{transform_indices = @transform_0, window_bounds = array<i64: 8, 128>}, {}, {}, {}, {pipeline_mode = #tpu.pipeline_mode<synchronous>, transform_indices = @transform_4, window_bounds = array<i64: 1, 1>}, {pipeline_mode = #tpu.pipeline_mode<synchronous>, transform_indices = @transform_5, window_bounds = array<i64: 1, 1>}]} {
    %c0_i32 = arith.constant 0 : i32
    %0 = arith.cmpi eq, %arg0, %c0_i32 : i32
    %1 = arith.extui %0 : i1 to i32
    %c0_i32_0 = arith.constant 0 : i32
    %2 = arith.cmpi ne, %1, %c0_i32_0 : i32
    scf.if %2 {
      %c0_i32_52 = arith.constant 0 : i32
      %c0_i32_53 = arith.constant 0 : i32
      %c0_i32_54 = arith.constant 0 : i32
      %126 = tpu.memref_slice %arg7[%c0_i32_53, %c0_i32_54] : memref<24x128xf32, #tpu.memory_space<vmem>> -> memref<8x128xf32, #tpu.memory_space<vmem>>
      %127 = tpu.memref_slice %arg13[%c0_i32_52] : memref<3x!tpu.dma_semaphore, #tpu.memory_space<semaphore_mem>> -> memref<1x!tpu.dma_semaphore, #tpu.memory_space<semaphore_mem>>
      %128 = tpu.memref_squeeze %127 : memref<1x!tpu.dma_semaphore, #tpu.memory_space<semaphore_mem>> -> memref<!tpu.dma_semaphore, #tpu.memory_space<semaphore_mem>>
      tpu.enqueue_dma source(%arg2 : memref<8x128xf32, #tpu.memory_space<any>>) target(%126 : memref<8x128xf32, #tpu.memory_space<vmem>>) target_semaphore(%128 : memref<!tpu.dma_semaphore, #tpu.memory_space<semaphore_mem>>)
      %c1_i32 = arith.constant 1 : i32
      %c8_i32_55 = arith.constant 8 : i32
      %c0_i32_56 = arith.constant 0 : i32
      %129 = tpu.memref_slice %arg7[%c8_i32_55, %c0_i32_56] : memref<24x128xf32, #tpu.memory_space<vmem>> -> memref<8x128xf32, #tpu.memory_space<vmem>>
      %130 = tpu.memref_slice %arg13[%c1_i32] : memref<3x!tpu.dma_semaphore, #tpu.memory_space<semaphore_mem>> -> memref<1x!tpu.dma_semaphore, #tpu.memory_space<semaphore_mem>>
      %131 = tpu.memref_squeeze %130 : memref<1x!tpu.dma_semaphore, #tpu.memory_space<semaphore_mem>> -> memref<!tpu.dma_semaphore, #tpu.memory_space<semaphore_mem>>
      tpu.enqueue_dma source(%arg3 : memref<8x128xf32, #tpu.memory_space<any>>) target(%129 : memref<8x128xf32, #tpu.memory_space<vmem>>) target_semaphore(%131 : memref<!tpu.dma_semaphore, #tpu.memory_space<semaphore_mem>>)
      %c2_i32 = arith.constant 2 : i32
      %c16_i32_57 = arith.constant 16 : i32
      %c0_i32_58 = arith.constant 0 : i32
      %132 = tpu.memref_slice %arg7[%c16_i32_57, %c0_i32_58] : memref<24x128xf32, #tpu.memory_space<vmem>> -> memref<8x128xf32, #tpu.memory_space<vmem>>
      %133 = tpu.memref_slice %arg13[%c2_i32] : memref<3x!tpu.dma_semaphore, #tpu.memory_space<semaphore_mem>> -> memref<1x!tpu.dma_semaphore, #tpu.memory_space<semaphore_mem>>
      %134 = tpu.memref_squeeze %133 : memref<1x!tpu.dma_semaphore, #tpu.memory_space<semaphore_mem>> -> memref<!tpu.dma_semaphore, #tpu.memory_space<semaphore_mem>>
      tpu.enqueue_dma source(%arg4 : memref<8x128xf32, #tpu.memory_space<any>>) target(%132 : memref<8x128xf32, #tpu.memory_space<vmem>>) target_semaphore(%134 : memref<!tpu.dma_semaphore, #tpu.memory_space<semaphore_mem>>)
      %c0_i32_59 = arith.constant 0 : i32
      %c0_i32_60 = arith.constant 0 : i32
      %c0_i32_61 = arith.constant 0 : i32
      %135 = tpu.memref_slice %arg7[%c0_i32_60, %c0_i32_61] : memref<24x128xf32, #tpu.memory_space<vmem>> -> memref<8x128xf32, #tpu.memory_space<vmem>>
      %136 = tpu.memref_slice %arg13[%c0_i32_59] : memref<3x!tpu.dma_semaphore, #tpu.memory_space<semaphore_mem>> -> memref<1x!tpu.dma_semaphore, #tpu.memory_space<semaphore_mem>>
      %137 = tpu.memref_squeeze %136 : memref<1x!tpu.dma_semaphore, #tpu.memory_space<semaphore_mem>> -> memref<!tpu.dma_semaphore, #tpu.memory_space<semaphore_mem>>
      tpu.wait_dma2 semaphore(%137 : memref<!tpu.dma_semaphore, #tpu.memory_space<semaphore_mem>>) src(%arg2 : memref<8x128xf32, #tpu.memory_space<any>>) dst(%135 : memref<8x128xf32, #tpu.memory_space<vmem>>)
      %c1_i32_62 = arith.constant 1 : i32
      %c8_i32_63 = arith.constant 8 : i32
      %c0_i32_64 = arith.constant 0 : i32
      %138 = tpu.memref_slice %arg7[%c8_i32_63, %c0_i32_64] : memref<24x128xf32, #tpu.memory_space<vmem>> -> memref<8x128xf32, #tpu.memory_space<vmem>>
      %139 = tpu.memref_slice %arg13[%c1_i32_62] : memref<3x!tpu.dma_semaphore, #tpu.memory_space<semaphore_mem>> -> memref<1x!tpu.dma_semaphore, #tpu.memory_space<semaphore_mem>>
      %140 = tpu.memref_squeeze %139 : memref<1x!tpu.dma_semaphore, #tpu.memory_space<semaphore_mem>> -> memref<!tpu.dma_semaphore, #tpu.memory_space<semaphore_mem>>
      tpu.wait_dma2 semaphore(%140 : memref<!tpu.dma_semaphore, #tpu.memory_space<semaphore_mem>>) src(%arg3 : memref<8x128xf32, #tpu.memory_space<any>>) dst(%138 : memref<8x128xf32, #tpu.memory_space<vmem>>)
      %c2_i32_65 = arith.constant 2 : i32
      %c16_i32_66 = arith.constant 16 : i32
      %c0_i32_67 = arith.constant 0 : i32
      %141 = tpu.memref_slice %arg7[%c16_i32_66, %c0_i32_67] : memref<24x128xf32, #tpu.memory_space<vmem>> -> memref<8x128xf32, #tpu.memory_space<vmem>>
      %142 = tpu.memref_slice %arg13[%c2_i32_65] : memref<3x!tpu.dma_semaphore, #tpu.memory_space<semaphore_mem>> -> memref<1x!tpu.dma_semaphore, #tpu.memory_space<semaphore_mem>>
      %143 = tpu.memref_squeeze %142 : memref<1x!tpu.dma_semaphore, #tpu.memory_space<semaphore_mem>> -> memref<!tpu.dma_semaphore, #tpu.memory_space<semaphore_mem>>
      tpu.wait_dma2 semaphore(%143 : memref<!tpu.dma_semaphore, #tpu.memory_space<semaphore_mem>>) src(%arg4 : memref<8x128xf32, #tpu.memory_space<any>>) dst(%141 : memref<8x128xf32, #tpu.memory_space<vmem>>)
      %c0_68 = arith.constant 0 : index
      %c0_69 = arith.constant 0 : index
      %144 = vector.load %arg7[%c0_68, %c0_69] : memref<24x128xf32, #tpu.memory_space<vmem>>, vector<24x128xf32>
      %145 = arith.mulf %144, %144 : vector<24x128xf32>
      %cst_70 = arith.constant dense<0.000000e+00> : vector<24xf32>
      %146 = vector.multi_reduction <add>, %145, %cst_70 [1] : vector<24x128xf32> to vector<24xf32>
      %147 = vector.shape_cast %146 : vector<24xf32> to vector<24x1xf32>
      %cst_71 = arith.constant 1.000000e-16 : f32
      %148 = vector.broadcast %cst_71 : f32 to vector<24x1xf32>
      %149 = arith.maximumf %147, %148 : vector<24x1xf32>
      %150 = math.rsqrt %149 : vector<24x1xf32>
      %151 = vector.broadcast %150 : vector<24x1xf32> to vector<24x128xf32>
      %152 = arith.mulf %144, %151 : vector<24x128xf32>
      %c0_72 = arith.constant 0 : index
      %c0_73 = arith.constant 0 : index
      %153 = vector.load %arg7[%c0_72, %c0_73] : memref<24x128xf32, #tpu.memory_space<vmem>>, vector<24x128xf32>
      tpu.vector_store %arg7[%c0_72, %c0_73], %152 {strides = array<i32>} : memref<24x128xf32, #tpu.memory_space<vmem>>, vector<24x128xf32>,
      %cst_74 = arith.constant -1.000000e+30 : f32
      %154 = vector.broadcast %cst_74 : f32 to vector<1x24xf32>
      %c0_75 = arith.constant 0 : index
      %c0_76 = arith.constant 0 : index
      %155 = vector.load %arg8[%c0_75, %c0_76] : memref<1x24xf32, #tpu.memory_space<vmem>>, vector<1x24xf32>
      tpu.vector_store %arg8[%c0_75, %c0_76], %154 {strides = array<i32>} : memref<1x24xf32, #tpu.memory_space<vmem>>, vector<1x24xf32>,
      %cst_77 = arith.constant 0.000000e+00 : f32
      %156 = vector.broadcast %cst_77 : f32 to vector<1x24xf32>
      %c0_78 = arith.constant 0 : index
      %c0_79 = arith.constant 0 : index
      %157 = vector.load %arg9[%c0_78, %c0_79] : memref<1x24xf32, #tpu.memory_space<vmem>>, vector<1x24xf32>
      tpu.vector_store %arg9[%c0_78, %c0_79], %156 {strides = array<i32>} : memref<1x24xf32, #tpu.memory_space<vmem>>, vector<1x24xf32>,
      %cst_80 = arith.constant 0.000000e+00 : f32
      %158 = vector.broadcast %cst_80 : f32 to vector<1x1xf32>
      %c0_81 = arith.constant 0 : index
      %c0_82 = arith.constant 0 : index
      %159 = vector.load %arg10[%c0_81, %c0_82] : memref<1x1xf32, #tpu.memory_space<vmem>>, vector<1x1xf32>
      tpu.vector_store %arg10[%c0_81, %c0_82], %158 {strides = array<i32>} : memref<1x1xf32, #tpu.memory_space<vmem>>, vector<1x1xf32>,
      %cst_83 = arith.constant 0.000000e+00 : f32
      %160 = vector.broadcast %cst_83 : f32 to vector<1x1xf32>
      %c0_84 = arith.constant 0 : index
      %c0_85 = arith.constant 0 : index
      %161 = vector.load %arg11[%c0_84, %c0_85] : memref<1x1xf32, #tpu.memory_space<vmem>>, vector<1x1xf32>
      tpu.vector_store %arg11[%c0_84, %c0_85], %160 {strides = array<i32>} : memref<1x1xf32, #tpu.memory_space<vmem>>, vector<1x1xf32>,
      %cst_86 = arith.constant 0.000000e+00 : f32
      %162 = vector.broadcast %cst_86 : f32 to vector<1x1xf32>
      %c0_87 = arith.constant 0 : index
      %c0_88 = arith.constant 0 : index
      %163 = vector.load %arg12[%c0_87, %c0_88] : memref<1x1xf32, #tpu.memory_space<vmem>>, vector<1x1xf32>
      tpu.vector_store %arg12[%c0_87, %c0_88], %162 {strides = array<i32>} : memref<1x1xf32, #tpu.memory_space<vmem>>, vector<1x1xf32>,
    } else {
    }
    %c0 = arith.constant 0 : index
    %c0_1 = arith.constant 0 : index
    %3 = vector.load %arg1[%c0, %c0_1] : memref<8x128xf32, #tpu.memory_space<vmem>>, vector<8x128xf32>
    %4 = arith.mulf %3, %3 : vector<8x128xf32>
    %cst = arith.constant dense<0.000000e+00> : vector<8xf32>
    %5 = vector.multi_reduction <add>, %4, %cst [1] : vector<8x128xf32> to vector<8xf32>
    %6 = vector.shape_cast %5 : vector<8xf32> to vector<8x1xf32>
    %cst_2 = arith.constant 1.000000e-16 : f32
    %7 = vector.broadcast %cst_2 : f32 to vector<8x1xf32>
    %8 = arith.maximumf %6, %7 : vector<8x1xf32>
    %9 = math.rsqrt %8 : vector<8x1xf32>
    %10 = vector.broadcast %9 : vector<8x1xf32> to vector<8x128xf32>
    %11 = arith.mulf %3, %10 : vector<8x128xf32>
    %c0_3 = arith.constant 0 : index
    %c0_4 = arith.constant 0 : index
    %12 = vector.load %arg7[%c0_3, %c0_4] : memref<24x128xf32, #tpu.memory_space<vmem>>, vector<24x128xf32>
    %cst_5 = arith.constant dense<0.000000e+00> : vector<8x24xf32>
    %13 = tpu.matmul %11, %12, %cst_5 {dimension_numbers = #tpu.dot_dimension_numbers<[1], [1], [0], [0], [0, 0, 1, 0], [], []>} : vector<8x128xf32>, vector<24x128xf32>, vector<8x24xf32> -> vector<8x24xf32>
    %cst_6 = arith.constant 2.000000e+01 : f32
    %14 = vector.broadcast %cst_6 : f32 to vector<8x24xf32>
    %15 = arith.mulf %13, %14 : vector<8x24xf32>
    %c8_i32 = arith.constant 8 : i32
    %16 = arith.muli %arg0, %c8_i32 : i32
    %17 = tpu.assume_multiple %16, 8 : i32
    %18 = arith.index_cast %17 : i32 to index
    %c0_7 = arith.constant 0 : index
    %19 = vector.load %arg7[%18, %c0_7] : memref<24x128xf32, #tpu.memory_space<vmem>>, vector<8x128xf32>
    %c8_i32_8 = arith.constant 8 : i32
    %20 = arith.addi %c8_i32_8, %17 : i32
    %21 = arith.index_cast %20 : i32 to index
    %c0_9 = arith.constant 0 : index
    %22 = vector.load %arg7[%21, %c0_9] : memref<24x128xf32, #tpu.memory_space<vmem>>, vector<8x128xf32>
    %c16_i32 = arith.constant 16 : i32
    %23 = arith.addi %c16_i32, %17 : i32
    %24 = arith.index_cast %23 : i32 to index
    %c0_10 = arith.constant 0 : index
    %25 = vector.load %arg7[%24, %c0_10] : memref<24x128xf32, #tpu.memory_space<vmem>>, vector<8x128xf32>
    %26 = arith.mulf %11, %19 : vector<8x128xf32>
    %cst_11 = arith.constant dense<0.000000e+00> : vector<8xf32>
    %27 = vector.multi_reduction <add>, %26, %cst_11 [1] : vector<8x128xf32> to vector<8xf32>
    %28 = vector.shape_cast %27 : vector<8xf32> to vector<8x1xf32>
    %cst_12 = arith.constant 2.000000e+01 : f32
    %29 = vector.broadcast %cst_12 : f32 to vector<8x1xf32>
    %30 = arith.mulf %28, %29 : vector<8x1xf32>
    %31 = arith.mulf %11, %22 : vector<8x128xf32>
    %cst_13 = arith.constant dense<0.000000e+00> : vector<8xf32>
    %32 = vector.multi_reduction <add>, %31, %cst_13 [1] : vector<8x128xf32> to vector<8xf32>
    %33 = vector.shape_cast %32 : vector<8xf32> to vector<8x1xf32>
    %cst_14 = arith.constant 2.000000e+01 : f32
    %34 = vector.broadcast %cst_14 : f32 to vector<8x1xf32>
    %35 = arith.mulf %33, %34 : vector<8x1xf32>
    %36 = arith.mulf %11, %25 : vector<8x128xf32>
    %cst_15 = arith.constant dense<0.000000e+00> : vector<8xf32>
    %37 = vector.multi_reduction <add>, %36, %cst_15 [1] : vector<8x128xf32> to vector<8xf32>
    %38 = vector.shape_cast %37 : vector<8xf32> to vector<8x1xf32>
    %cst_16 = arith.constant 2.000000e+01 : f32
    %39 = vector.broadcast %cst_16 : f32 to vector<8x1xf32>
    %40 = arith.mulf %38, %39 : vector<8x1xf32>
    %cst_17 = arith.constant dense<0xFF800000> : vector<8xf32>
    %41 = vector.multi_reduction <maximumf>, %15, %cst_17 [1] : vector<8x24xf32> to vector<8xf32>
    %42 = vector.shape_cast %41 : vector<8xf32> to vector<8x1xf32>
    %43 = vector.broadcast %42 : vector<8x1xf32> to vector<8x24xf32>
    %44 = arith.subf %15, %43 : vector<8x24xf32>
    %45 = math.exp %44 : vector<8x24xf32>
    %46 = vector.extract_strided_slice %45 {offsets = [0, 0], sizes = [8, 8], strides = [1, 1]} : vector<8x24xf32> to vector<8x8xf32>
    %cst_18 = arith.constant dense<0.000000e+00> : vector<8xf32>
    %47 = vector.multi_reduction <add>, %46, %cst_18 [1] : vector<8x8xf32> to vector<8xf32>
    %48 = vector.shape_cast %47 : vector<8xf32> to vector<8x1xf32>
    %49 = vector.extract_strided_slice %45 {offsets = [0, 8], sizes = [8, 8], strides = [1, 1]} : vector<8x24xf32> to vector<8x8xf32>
    %cst_19 = arith.constant dense<0.000000e+00> : vector<8xf32>
    %50 = vector.multi_reduction <add>, %49, %cst_19 [1] : vector<8x8xf32> to vector<8xf32>
    %51 = vector.shape_cast %50 : vector<8xf32> to vector<8x1xf32>
    %52 = vector.extract_strided_slice %45 {offsets = [0, 16], sizes = [8, 8], strides = [1, 1]} : vector<8x24xf32> to vector<8x8xf32>
    %cst_20 = arith.constant dense<0.000000e+00> : vector<8xf32>
    %53 = vector.multi_reduction <add>, %52, %cst_20 [1] : vector<8x8xf32> to vector<8xf32>
    %54 = vector.shape_cast %53 : vector<8xf32> to vector<8x1xf32>
    %55 = arith.subf %30, %42 : vector<8x1xf32>
    %56 = math.exp %55 : vector<8x1xf32>
    %57 = arith.subf %35, %42 : vector<8x1xf32>
    %58 = math.exp %57 : vector<8x1xf32>
    %59 = arith.subf %40, %42 : vector<8x1xf32>
    %60 = math.exp %59 : vector<8x1xf32>
    %61 = arith.subf %51, %58 : vector<8x1xf32>
    %62 = arith.addf %48, %61 : vector<8x1xf32>
    %63 = arith.subf %54, %60 : vector<8x1xf32>
    %64 = arith.addf %62, %63 : vector<8x1xf32>
    %65 = math.log %64 : vector<8x1xf32>
    %66 = arith.addf %42, %65 : vector<8x1xf32>
    %67 = arith.subf %48, %56 : vector<8x1xf32>
    %68 = arith.addf %67, %51 : vector<8x1xf32>
    %69 = arith.subf %54, %60 : vector<8x1xf32>
    %70 = arith.addf %68, %69 : vector<8x1xf32>
    %71 = math.log %70 : vector<8x1xf32>
    %72 = arith.addf %42, %71 : vector<8x1xf32>
    %73 = arith.subf %48, %56 : vector<8x1xf32>
    %74 = arith.subf %51, %58 : vector<8x1xf32>
    %75 = arith.addf %73, %74 : vector<8x1xf32>
    %76 = arith.addf %75, %54 : vector<8x1xf32>
    %77 = math.log %76 : vector<8x1xf32>
    %78 = arith.addf %42, %77 : vector<8x1xf32>
    %79 = arith.subf %30, %66 : vector<8x1xf32>
    %80 = arith.subf %35, %72 : vector<8x1xf32>
    %81 = arith.addf %79, %80 : vector<8x1xf32>
    %82 = arith.subf %40, %78 : vector<8x1xf32>
    %83 = arith.addf %81, %82 : vector<8x1xf32>
    %c0_21 = arith.constant 0 : index
    %c0_22 = arith.constant 0 : index
    %84 = vector.load %arg10[%c0_21, %c0_22] : memref<1x1xf32, #tpu.memory_space<vmem>>, vector<1x1xf32>
    %cst_23 = arith.constant dense<0.000000e+00> : vector<1xf32>
    %85 = vector.multi_reduction <add>, %83, %cst_23 [0] : vector<8x1xf32> to vector<1xf32>
    %86 = vector.shape_cast %85 : vector<1xf32> to vector<1x1xf32>
    %87 = arith.addf %84, %86 : vector<1x1xf32>
    %c0_24 = arith.constant 0 : index
    %c0_25 = arith.constant 0 : index
    %88 = vector.load %arg10[%c0_24, %c0_25] : memref<1x1xf32, #tpu.memory_space<vmem>>, vector<1x1xf32>
    tpu.vector_store %arg10[%c0_24, %c0_25], %87 {strides = array<i32>} : memref<1x1xf32, #tpu.memory_space<vmem>>, vector<1x1xf32>,
    %c0_26 = arith.constant 0 : index
    %c0_27 = arith.constant 0 : index
    %89 = vector.load %arg11[%c0_26, %c0_27] : memref<1x1xf32, #tpu.memory_space<vmem>>, vector<1x1xf32>
    %90 = arith.addf %30, %35 : vector<8x1xf32>
    %91 = arith.addf %90, %40 : vector<8x1xf32>
    %cst_28 = arith.constant dense<0.000000e+00> : vector<1xf32>
    %92 = vector.multi_reduction <add>, %91, %cst_28 [0] : vector<8x1xf32> to vector<1xf32>
    %93 = vector.shape_cast %92 : vector<1xf32> to vector<1x1xf32>
    %94 = arith.addf %89, %93 : vector<1x1xf32>
    %c0_29 = arith.constant 0 : index
    %c0_30 = arith.constant 0 : index
    %95 = vector.load %arg11[%c0_29, %c0_30] : memref<1x1xf32, #tpu.memory_space<vmem>>, vector<1x1xf32>
    tpu.vector_store %arg11[%c0_29, %c0_30], %94 {strides = array<i32>} : memref<1x1xf32, #tpu.memory_space<vmem>>, vector<1x1xf32>,
    %c0_31 = arith.constant 0 : index
    %c0_32 = arith.constant 0 : index
    %96 = vector.load %arg12[%c0_31, %c0_32] : memref<1x1xf32, #tpu.memory_space<vmem>>, vector<1x1xf32>
    %97 = arith.subf %30, %35 : vector<8x1xf32>
    %cst_33 = arith.constant 5.000000e+00 : f32
    %98 = vector.broadcast %cst_33 : f32 to vector<8x1xf32>
    %99 = arith.subf %98, %97 : vector<8x1xf32>
    %cst_34 = arith.constant 0.000000e+00 : f32
    %100 = vector.broadcast %cst_34 : f32 to vector<8x1xf32>
    %101 = arith.maximumf %99, %100 : vector<8x1xf32>
    %cst_35 = arith.constant dense<0.000000e+00> : vector<1xf32>
    %102 = vector.multi_reduction <add>, %101, %cst_35 [0] : vector<8x1xf32> to vector<1xf32>
    %103 = vector.shape_cast %102 : vector<1xf32> to vector<1x1xf32>
    %104 = arith.addf %96, %103 : vector<1x1xf32>
    %c0_36 = arith.constant 0 : index
    %c0_37 = arith.constant 0 : index
    %105 = vector.load %arg12[%c0_36, %c0_37] : memref<1x1xf32, #tpu.memory_space<vmem>>, vector<1x1xf32>
    tpu.vector_store %arg12[%c0_36, %c0_37], %104 {strides = array<i32>} : memref<1x1xf32, #tpu.memory_space<vmem>>, vector<1x1xf32>,
    %cst_38 = arith.constant dense<0xFF800000> : vector<24xf32>
    %106 = vector.multi_reduction <maximumf>, %15, %cst_38 [0] : vector<8x24xf32> to vector<24xf32>
    %107 = vector.shape_cast %106 : vector<24xf32> to vector<1x24xf32>
    %c0_39 = arith.constant 0 : index
    %c0_40 = arith.constant 0 : index
    %108 = vector.load %arg8[%c0_39, %c0_40] : memref<1x24xf32, #tpu.memory_space<vmem>>, vector<1x24xf32>
    %109 = arith.maximumf %108, %107 : vector<1x24xf32>
    %c0_41 = arith.constant 0 : index
    %c0_42 = arith.constant 0 : index
    %110 = vector.load %arg9[%c0_41, %c0_42] : memref<1x24xf32, #tpu.memory_space<vmem>>, vector<1x24xf32>
    %c0_43 = arith.constant 0 : index
    %c0_44 = arith.constant 0 : index
    %111 = vector.load %arg8[%c0_43, %c0_44] : memref<1x24xf32, #tpu.memory_space<vmem>>, vector<1x24xf32>
    %112 = arith.subf %111, %109 : vector<1x24xf32>
    %113 = math.exp %112 : vector<1x24xf32>
    %114 = arith.mulf %110, %113 : vector<1x24xf32>
    %115 = vector.broadcast %109 : vector<1x24xf32> to vector<8x24xf32>
    %116 = arith.subf %15, %115 : vector<8x24xf32>
    %117 = math.exp %116 : vector<8x24xf32>
    %cst_45 = arith.constant dense<0.000000e+00> : vector<24xf32>
    %118 = vector.multi_reduction <add>, %117, %cst_45 [0] : vector<8x24xf32> to vector<24xf32>
    %119 = vector.shape_cast %118 : vector<24xf32> to vector<1x24xf32>
    %120 = arith.addf %114, %119 : vector<1x24xf32>
    %c0_46 = arith.constant 0 : index
    %c0_47 = arith.constant 0 : index
    %121 = vector.load %arg9[%c0_46, %c0_47] : memref<1x24xf32, #tpu.memory_space<vmem>>, vector<1x24xf32>
    tpu.vector_store %arg9[%c0_46, %c0_47], %120 {strides = array<i32>} : memref<1x24xf32, #tpu.memory_space<vmem>>, vector<1x24xf32>,
    %c0_48 = arith.constant 0 : index
    %c0_49 = arith.constant 0 : index
    %122 = vector.load %arg8[%c0_48, %c0_49] : memref<1x24xf32, #tpu.memory_space<vmem>>, vector<1x24xf32>
    tpu.vector_store %arg8[%c0_48, %c0_49], %109 {strides = array<i32>} : memref<1x24xf32, #tpu.memory_space<vmem>>, vector<1x24xf32>,
    %c0_i32_50 = arith.constant 0 : i32
    %123 = arith.cmpi eq, %arg0, %c0_i32_50 : i32
    %124 = arith.extui %123 : i1 to i32
    %c0_i32_51 = arith.constant 0 : i32
    %125 = arith.cmpi ne, %124, %c0_i32_51 : i32
    scf.if %125 {
      %c0_52 = arith.constant 0 : index
      %c0_53 = arith.constant 0 : index
      %126 = vector.load %arg8[%c0_52, %c0_53] : memref<1x24xf32, #tpu.memory_space<vmem>>, vector<1x24xf32>
      %c0_54 = arith.constant 0 : index
      %c0_55 = arith.constant 0 : index
      %127 = vector.load %arg9[%c0_54, %c0_55] : memref<1x24xf32, #tpu.memory_space<vmem>>, vector<1x24xf32>
      %128 = math.log %127 : vector<1x24xf32>
      %129 = arith.addf %126, %128 : vector<1x24xf32>
      %cst_56 = arith.constant dense<0.000000e+00> : vector<1xf32>
      %130 = vector.multi_reduction <add>, %129, %cst_56 [1] : vector<1x24xf32> to vector<1xf32>
      %131 = vector.shape_cast %130 : vector<1xf32> to vector<1x1xf32>
      %c0_57 = arith.constant 0 : index
      %c0_58 = arith.constant 0 : index
      %132 = vector.load %arg10[%c0_57, %c0_58] : memref<1x1xf32, #tpu.memory_space<vmem>>, vector<1x1xf32>
      %cst_59 = arith.constant 0.000000e+00 : f32
      %133 = vector.broadcast %cst_59 : f32 to vector<1x1xf32>
      %134 = arith.subf %133, %132 : vector<1x1xf32>
      %cst_60 = arith.constant 8.000000e+00 : f32
      %135 = vector.broadcast %cst_60 : f32 to vector<1x1xf32>
      %136 = arith.divf %134, %135 : vector<1x1xf32>
      %c0_61 = arith.constant 0 : index
      %c0_62 = arith.constant 0 : index
      %137 = vector.load %arg11[%c0_61, %c0_62] : memref<1x1xf32, #tpu.memory_space<vmem>>, vector<1x1xf32>
      %138 = arith.subf %137, %131 : vector<1x1xf32>
      %cst_63 = arith.constant 0.000000e+00 : f32
      %139 = vector.broadcast %cst_63 : f32 to vector<1x1xf32>
      %140 = arith.subf %139, %138 : vector<1x1xf32>
      %cst_64 = arith.constant 2.400000e+01 : f32
      %141 = vector.broadcast %cst_64 : f32 to vector<1x1xf32>
      %142 = arith.divf %140, %141 : vector<1x1xf32>
      %143 = arith.addf %136, %142 : vector<1x1xf32>
      %c0_65 = arith.constant 0 : index
      %c0_66 = arith.constant 0 : index
      %144 = vector.load %arg5[%c0_65, %c0_66] : memref<1x1xf32, #tpu.memory_space<vmem>>, vector<1x1xf32>
      tpu.vector_store %arg5[%c0_65, %c0_66], %143 {strides = array<i32>} : memref<1x1xf32, #tpu.memory_space<vmem>>, vector<1x1xf32>,
      %c0_67 = arith.constant 0 : index
      %c0_68 = arith.constant 0 : index
      %145 = vector.load %arg12[%c0_67, %c0_68] : memref<1x1xf32, #tpu.memory_space<vmem>>, vector<1x1xf32>
      %cst_69 = arith.constant 8.000000e+00 : f32
      %146 = vector.broadcast %cst_69 : f32 to vector<1x1xf32>
      %147 = arith.divf %145, %146 : vector<1x1xf32>
      %c0_70 = arith.constant 0 : index
      %c0_71 = arith.constant 0 : index
      %148 = vector.load %arg6[%c0_70, %c0_71] : memref<1x1xf32, #tpu.memory_space<vmem>>, vector<1x1xf32>
      tpu.vector_store %arg6[%c0_70, %c0_71], %147 {strides = array<i32>} : memref<1x1xf32, #tpu.memory_space<vmem>>, vector<1x1xf32>,
    } else {
    }
    return
  }
  func.func @transform_0(%arg0: i32) -> (i32, i32) {
    %c0_i32 = arith.constant 0 : i32
    %c0_i32_0 = arith.constant 0 : i32
    return %arg0, %c0_i32 : i32, i32
  }
  func.func @transform_4(%arg0: i32) -> (i32, i32) {
    %c0_i32 = arith.constant 0 : i32
    %c0_i32_0 = arith.constant 0 : i32
    %c0_i32_1 = arith.constant 0 : i32
    return %c0_i32, %c0_i32_0 : i32, i32
  }
  func.func @transform_5(%arg0: i32) -> (i32, i32) {
    %c0_i32 = arith.constant 0 : i32
    %c0_i32_0 = arith.constant 0 : i32
    %c0_i32_1 = arith.constant 0 : i32
    return %c0_i32, %c0_i32_0 : i32, i32
  }
}

</mosaic_0001>

<llo_original>
// kernel: exclusive_nce_with_ranking_loss.1
$region0: #{exclusive_nce_with_ranking_loss.1}
  #allocation0 [shape = 'u32[]', space=smem, size = 0x4, offset = 0x4, fixed_abs, tag = 'smem constant byte address 0x4 - core index']
  #allocation1 [shape = 'u32[144,128]{1,0:T(1,128)}', space=vmem, size = 0x12000, scoped, tag = 'internal scratch']
  #allocation2 [shape = 'f32[24,128]{1,0:T(8,128)}', space=vmem, size = 0x3000, scoped, tag = 'scratch operand']
  #allocation3 [shape = 'f32[1,24]{1,0:T(1,128)}', space=vmem, size = 0x200, scoped, tag = 'scratch operand']
  #allocation4 [shape = 'f32[1,24]{1,0:T(1,128)}', space=vmem, size = 0x200, scoped, tag = 'scratch operand']
  #allocation5 [shape = 'f32[1,1]{1,0:T(1,128)}', space=vmem, size = 0x200, scoped, tag = 'scratch operand']
  #allocation6 [shape = 'f32[1,1]{1,0:T(1,128)}', space=vmem, size = 0x200, scoped, tag = 'scratch operand']
  #allocation7 [shape = 'f32[1,1]{1,0:T(1,128)}', space=vmem, size = 0x200, scoped, tag = 'scratch operand']
  #allocation8 [shape = 's32[3]{0}', space=sflag, size = 0xc, scoped, tag = 'scratch operand']
  #allocation15 [shape = 's32[]', space=sflag, size = 0x4, offset = 0, fixed_abs, tag = 'sflag constant byte address 0x0 - dummy sync flag']
  #allocation16 [shape = 's32[]', space=sflag, size = 0x4, offset = 0, fixed_abs, tag = 'sflag constant byte address 0x0 - dummy sync flag']
  #allocation17 [shape = 'u32[]', space=smem, size = 0x4, offset = 0x44, fixed_abs, tag = 'smem constant byte address 0x44 - assertion arg 0']
  #allocation18 [shape = 'u32[]', space=smem, size = 0x4, offset = 0x48, fixed_abs, tag = 'smem constant byte address 0x48 - assertion arg 1']
  #allocation19 [shape = 's32[]', space=sflag, size = 0x4, offset = 0, fixed_abs, tag = 'sflag constant byte address 0x0 - dummy sync flag']
  #allocation20 [shape = 's32[]', space=sflag, size = 0x4, offset = 0, fixed_abs, tag = 'sflag constant byte address 0x0 - dummy sync flag']
  #allocation21 [shape = 's32[]', space=sflag, size = 0x4, offset = 0, fixed_abs, tag = 'sflag constant byte address 0x0 - dummy sync flag']
  %s0 = inlined_call_operand.hbm [shape: f32[8,128], index: 0, kind: input, shape index: {}]
  %s1 = inlined_call_operand.hbm [shape: f32[8,128], index: 1, kind: input, shape index: {}]
  %s2 = inlined_call_operand.hbm [shape: f32[8,128], index: 2, kind: input, shape index: {}]
  %s3 = inlined_call_operand.vmem [shape: f32[8,128], index: 3, kind: input, shape index: {}]
  %s4 = inlined_call_operand.hbm [shape: f32[1,1], index: 4, kind: output, shape index: {0}]
  %s5 = inlined_call_operand.hbm [shape: f32[1,1], index: 5, kind: output, shape index: {1}]
  %6 = xla_tuple %s4, %s5
  %s7 = sld [smem:[#allocation0]]
  $region76: #{exclusive_nce_with_ranking_loss.1} parent=0
    _
  %s9 = ssub.s32 1, %s7
  %s10 = scalar_select 0, %s9, %s7
  $region1: #{exclusive_nce_with_ranking_loss.1} parent=0
    #allocation9 [shape = 'u8[4096]{0}', space=vmem, size = 0x1000, scoped, tag = 'input window, operand 0, single buffered']
    #allocation10 [shape = 's32[1]{0}', space=sflag, size = 0x4, scoped, tag = 'scoped memory for exclusive_nce_with_ranking_loss.1']
    #allocation11 [shape = 's32[1]{0}', space=sflag, size = 0x4, scoped, tag = 'scoped memory for exclusive_nce_with_ranking_loss.1']
    #allocation12 [shape = 'u8[512]{0}', space=vmem, size = 0x400, scoped, tag = 'output window, operand 0, single buffered']
    #allocation13 [shape = 'u8[512]{0}', space=vmem, size = 0x400, scoped, tag = 'output window, operand 1, single buffered']
    #allocation14 [shape = 's32[1]{0}', space=sflag, size = 0x4, scoped, tag = 'scoped memory for exclusive_nce_with_ranking_loss.1']
    %11 = vsyncpa [#allocation10], 0
    %12 = vsyncpa [#allocation11], 0
    %13 = vsyncpa [#allocation14], 0
    // Predicated region
    $region2: #{exclusive_nce_with_ranking_loss.1} parent=1 // pred_check
      _
    $region3: #{exclusive_nce_with_ranking_loss.1} parent=1 // pred_check_branch
      %15 = sbr.rel (0) target = $region5
    $region4: #{exclusive_nce_with_ranking_loss.1} parent=1 // pred_region
      %s17 = ssub.s32 128, 128
      %18 = vsyncadd [#allocation10], %s17
      %s20 = sshll.u32 [#allocation9], 4
      %s21 = int_to_ptr.vmem [resolvable:$true] %s20
      %23 = dma.hbm_to_vmem [thread:$0]  %s0, 128, %s21, [#allocation10]
    $region5: #{exclusive_nce_with_ranking_loss.1} parent=1 // pred_fallthru
      _
    // Predicated region
    $region6: #{exclusive_nce_with_ranking_loss.1} parent=1 // pred_check
      _
    $region7: #{exclusive_nce_with_ranking_loss.1} parent=1 // pred_check_branch
      %25 = sbr.rel (0) target = $region9
    $region8: #{exclusive_nce_with_ranking_loss.1} parent=1 // pred_region
      %26 = dma.done [#allocation10], 128
    $region9: #{exclusive_nce_with_ranking_loss.1} parent=1 // pred_fallthru
      _
    %p27 = scmp.eq.s32.totalorder 0, 0
    // Predicated region
    $region10: #{exclusive_nce_with_ranking_loss.1} parent=1 // pred_check
      %p28 = pneg %p27
    $region11: #{exclusive_nce_with_ranking_loss.1} parent=1 // pred_check_branch
      %30 = sbr.rel (%p28) target = $region13
    $region12: #{exclusive_nce_with_ranking_loss.1} parent=1 // pred_region
      // Predicated region
      $region14: #{exclusive_nce_with_ranking_loss.1} parent=12 // pred_check
        _
      $region15: #{exclusive_nce_with_ranking_loss.1} parent=12 // pred_check_branch
        %32 = sbr.rel target = $region17
      $region16: #{exclusive_nce_with_ranking_loss.1} parent=12 // pred_region
        %33 = sst [smem:[#allocation17]] [#allocation16]
        %34 = sst [smem:[#allocation18]] [#allocation15]
      $region17: #{exclusive_nce_with_ranking_loss.1} parent=12 // pred_fallthru
        _
      %36 = shalt.err (0)
      %s38 = sshll.u32 [#allocation2], 4
      %s39 = int_to_ptr.vmem [resolvable:$true] %s38
      %41 = dma.hbm_to_vmem [thread:$0]  %s1, 128, %s39, [#allocation8]
      %s42 = scalar_lea.vmem [#allocation2], 8
      %s43 = scalar_lea.sflag [#allocation8], 1
      // Predicated region
      $region18: #{exclusive_nce_with_ranking_loss.1} parent=12 // pred_check
        _
      $region19: #{exclusive_nce_with_ranking_loss.1} parent=12 // pred_check_branch
        %45 = sbr.rel target = $region21
      $region20: #{exclusive_nce_with_ranking_loss.1} parent=12 // pred_region
        %46 = sst [smem:[#allocation17]] [#allocation20]
        %47 = sst [smem:[#allocation18]] [#allocation19]
      $region21: #{exclusive_nce_with_ranking_loss.1} parent=12 // pred_fallthru
        _
      %49 = shalt.err (0)
      %s51 = sshll.u32 %s42, 4
      %s52 = int_to_ptr.vmem [resolvable:$true] %s51
      %54 = dma.hbm_to_vmem [thread:$0]  %s2, 128, %s52, %s43
      %s55 = scalar_lea.vmem [#allocation2], 16
      %s56 = scalar_lea.sflag [#allocation8], 2
      %p58 = scmp.lt.u32.totalorder 8, 8
      %p59 = pneg %p58
      // Predicated region
      $region22: #{exclusive_nce_with_ranking_loss.1} parent=12 // pred_check
        _
      $region23: #{exclusive_nce_with_ranking_loss.1} parent=12 // pred_check_branch
        %61 = sbr.rel (%p58) target = $region25
      $region24: #{exclusive_nce_with_ranking_loss.1} parent=12 // pred_region
        %s76 = sand.u32 8, 7
        %p77 = scmp.eq.s32.totalorder %s76, 0
        // Predicated region
        $region37: #{exclusive_nce_with_ranking_loss.1} parent=24 // pred_check
          %p78 = pneg %p77
        $region38: #{exclusive_nce_with_ranking_loss.1} parent=24 // pred_check_branch
          %80 = sbr.rel (%p78) target = $region40
        $region39: #{exclusive_nce_with_ranking_loss.1} parent=24 // pred_region
          loop: start=0, step=1, limit=1
          $region41: #{exclusive_nce_with_ranking_loss.1} parent=39 // loop_pre_header
            _
          $region42: #{exclusive_nce_with_ranking_loss.1} parent=39 // loop_header
            %s82 = sphi 0, %s86
            %p83 = scmp.ge.s32.totalorder %s82, 1
            %s87 = sphi %s3, %s3
            %s88 = sphi %s55, %s55
          $region43: #{exclusive_nce_with_ranking_loss.1} parent=39 // loop_header_branch
            %85 = sbr.rel (%p83) target = $region47
          $region44: #{exclusive_nce_with_ranking_loss.1} parent=39 // loop_body
            %v89 = vld [vmem:[%s87] sm:$0xff]
            %90 = vst [vmem:[%s88] sm:$0xff] %v89
          $region45: #{exclusive_nce_with_ranking_loss.1} parent=39 // loop_footer
            %s86 = sadd.s32 1, %s82
          $region46: #{exclusive_nce_with_ranking_loss.1} parent=39 // loop_footer_branch
            %81 = sbr.rel target = $region42
          $region47: #{exclusive_nce_with_ranking_loss.1} parent=39 // loop_exit
            _
        $region40: #{exclusive_nce_with_ranking_loss.1} parent=24 // pred_fallthru
          _
        %p91 = pneg %p77
        // Predicated region
        $region48: #{exclusive_nce_with_ranking_loss.1} parent=24 // pred_check
          _
        $region49: #{exclusive_nce_with_ranking_loss.1} parent=24 // pred_check_branch
          %93 = sbr.rel (%p77) target = $region51
        $region50: #{exclusive_nce_with_ranking_loss.1} parent=24 // pred_region
          %s94 = sand.u32 8, 7
        $region51: #{exclusive_nce_with_ranking_loss.1} parent=24 // pred_fallthru
          _
      $region25: #{exclusive_nce_with_ranking_loss.1} parent=12 // pred_fallthru
        _
      // Predicated region
      $region26: #{exclusive_nce_with_ranking_loss.1} parent=12 // pred_check
        %p62 = pneg %p58
      $region27: #{exclusive_nce_with_ranking_loss.1} parent=12 // pred_check_branch
        %64 = sbr.rel (%p62) target = $region29
      $region28: #{exclusive_nce_with_ranking_loss.1} parent=12 // pred_region
        %s65 = sshllo.u32 0, 8
        loop: start=0, step=1, limit=1
        $region30: #{exclusive_nce_with_ranking_loss.1} parent=28 // loop_pre_header
          _
        $region31: #{exclusive_nce_with_ranking_loss.1} parent=28 // loop_header
          %s67 = sphi 0, %s71
          %p68 = scmp.ge.s32.totalorder %s67, 1
          %s72 = sphi %s3, %s3
          %s73 = sphi %s55, %s55
        $region32: #{exclusive_nce_with_ranking_loss.1} parent=28 // loop_header_branch
          %70 = sbr.rel (%p68) target = $region36
        $region33: #{exclusive_nce_with_ranking_loss.1} parent=28 // loop_body
          %v74 = vld [vmem:[%s72] sm:%s65]
          %75 = vst [vmem:[%s73] sm:%s65] %v74
        $region34: #{exclusive_nce_with_ranking_loss.1} parent=28 // loop_footer
          %s71 = sadd.s32 1, %s67
        $region35: #{exclusive_nce_with_ranking_loss.1} parent=28 // loop_footer_branch
          %66 = sbr.rel target = $region31
        $region36: #{exclusive_nce_with_ranking_loss.1} parent=28 // loop_exit
          _
      $region29: #{exclusive_nce_with_ranking_loss.1} parent=12 // pred_fallthru
        _
      // Predicated region
      $region52: #{exclusive_nce_with_ranking_loss.1} parent=12 // pred_check
        _
      $region53: #{exclusive_nce_with_ranking_loss.1} parent=12 // pred_check_branch
        %97 = sbr.rel (0) target = $region55
      $region54: #{exclusive_nce_with_ranking_loss.1} parent=12 // pred_region
        %98 = vsyncadd %s56, 128
      $region55: #{exclusive_nce_with_ranking_loss.1} parent=12 // pred_fallthru
        _
      %s99 = smul.u32 8, 1
      %s100 = sshll.u32 %s99, 4
      %101 = dma.done [#allocation8], %s100
      %s102 = sshll.u32 %s99, 4
      %103 = dma.done %s43, %s102
      %s104 = sshll.u32 %s99, 4
      %105 = dma.done %s56, %s104
      %v106 = vld [vmem:[#allocation2] sm:$0xff]
      %v107 = vld [vmem:[#allocation2 + $0x8] sm:$0xff]
      %v108 = vld [vmem:[#allocation2 + $0x10] sm:$0xff]
      %v109 = vmul.f32 %v106, %v106
      %v110 = vmul.f32 %v107, %v107
      %v111 = vmul.f32 %v108, %v108
      %112 = vadd.xlane.f32.xlu0 %v109
      %v113 = vpop.xlane.xlu0 %112
      %114 = vadd.xlane.f32.xlu0 %v110
      %v115 = vpop.xlane.xlu0 %114
      %116 = vadd.xlane.f32.xlu0 %v111
      %v117 = vpop.xlane.xlu0 %116
      %v118 = vmax.f32 %v113, 1e-16
      %v119 = vmax.f32 %v115, 1e-16
      %v120 = vmax.f32 %v117, 1e-16
      %v121 = vrsqrt.pop %v118
      %v122 = vrsqrt.pop %v119
      %v123 = vrsqrt.pop %v120
      %v124 = vmul.f32 %v106, %v121
      %v125 = vmul.f32 %v107, %v122
      %v126 = vmul.f32 %v108, %v123
      %127 = vst [vmem:[#allocation2] sm:$0xff] %v124
      %128 = vst [vmem:[#allocation2 + $0x8] sm:$0xff] %v125
      %129 = vst [vmem:[#allocation2 + $0x10] sm:$0xff] %v126
      %vm130 = vcmask 188416
      %131 = vst.msk [vmem:[#allocation3] sm:$0x1] %vm130, -1e+30
      %132 = vst.msk [vmem:[#allocation4] sm:$0x1] %vm130, 0.0
      %vm133 = vcmask 0
      %134 = vst.msk [vmem:[#allocation5] sm:$0x1] %vm133, 0.0
      %135 = vst.msk [vmem:[#allocation6] sm:$0x1] %vm133, 0.0
      %136 = vst.msk [vmem:[#allocation7] sm:$0x1] %vm133, 0.0
    $region13: #{exclusive_nce_with_ranking_loss.1} parent=1 // pred_fallthru
      _
    %v137 = vld [vmem:[#allocation9] sm:$0xff]
    %v138 = vmul.f32 %v137, %v137
    %139 = vadd.xlane.f32.xlu0 %v138
    %v140 = vpop.xlane.xlu0 %139
    %v141 = vmax.f32 %v140, 1e-16
    %v142 = vrsqrt.pop %v141
    %v143 = vmul.f32 %v137, %v142
    %v144 = vld [vmem:[#allocation2] sm:$0xff]
    %v145 = vld [vmem:[#allocation2 + $0x8] sm:$0xff]
    %v146 = vld [vmem:[#allocation2 + $0x10] sm:$0xff]
    %147 = vmatprep.subr.mxu0 0.0
    %148 = vmatpush1.xpose.msra.mxu0 %v144
    %149 = vmatprep.subr.mxu0 0.0
    %150 = vmatpush1.xpose.msra.mxu0 %v145
    %151 = vmatprep.subr.mxu0 0.0
    %152 = vmatpush1.xpose.msra.mxu0 %v146
    %153 = vmatprep.subr.mxu0 0.0
    %154 = vmatpush1.xpose.msra.mxu0 0.0
    %155 = vmatprep.subr.mxu0 0.0
    %156 = vmatpush1.xpose.msra.mxu0 0.0
    %157 = vmatprep.subr.mxu0 0.0
    %158 = vmatpush1.xpose.msra.mxu0 0.0
    %159 = vmatprep.subr.mxu0 0.0
    %160 = vmatpush1.xpose.msra.mxu0 0.0
    %161 = vmatprep.subr.mxu0 0.0
    %162 = vmatpush1.xpose.msra.mxu0 0.0
    %163 = vmatprep.subr.mxu0 0.0
    %164 = vmatpush1.xpose.msra.mxu0 0.0
    %165 = vmatprep.subr.mxu0 0.0
    %166 = vmatpush1.xpose.msra.mxu0 0.0
    %167 = vmatprep.subr.mxu0 0.0
    %168 = vmatpush1.xpose.msra.mxu0 0.0
    %169 = vmatprep.subr.mxu0 0.0
    %170 = vmatpush1.xpose.msra.mxu0 0.0
    %171 = vmatprep.subr.mxu0 0.0
    %172 = vmatpush1.xpose.msra.mxu0 0.0
    %173 = vmatprep.subr.mxu0 0.0
    %174 = vmatpush1.xpose.msra.mxu0 0.0
    %175 = vmatprep.subr.mxu0 0.0
    %176 = vmatpush1.xpose.msra.mxu0 0.0
    %177 = vmatprep.subr.mxu0 0.0
    %178 = vmatpush1.xpose.msra.mxu0 0.0
    %179 = vmatprep.subr.mxu0 0.0
    %180 = vmatpush1.xpose.msra.mxu0 0.0
    %181 = vmatprep.subr.mxu0 0.0
    %182 = vmatpush1.xpose.msra.mxu0 0.0
    %183 = vmatprep.subr.mxu0 0.0
    %184 = vmatpush1.xpose.msra.mxu0 0.0
    %185 = vmatprep.subr.mxu0 0.0
    %186 = vmatpush1.xpose.msra.mxu0 0.0
    %187 = vmatprep.subr.mxu0 0.0
    %188 = vmatpush1.xpose.msra.mxu0 0.0
    %189 = vmatprep.subr.mxu0 0.0
    %190 = vmatpush1.xpose.msra.mxu0 0.0
    %191 = vmatprep.subr.mxu0 0.0
    %192 = vmatpush1.xpose.msra.mxu0 0.0
    %193 = vmatprep.subr.mxu0 0.0
    %194 = vmatpush1.xpose.msra.mxu0 0.0
    %195 = vmatprep.subr.mxu0 0.0
    %196 = vmatpush1.xpose.msra.mxu0 0.0
    %197 = vmatprep.subr.mxu0 0.0
    %198 = vmatpush1.xpose.msra.mxu0 0.0
    %199 = vmatprep.subr.mxu0 0.0
    %200 = vmatpush1.xpose.msra.mxu0 0.0
    %201 = vmatprep.subr.mxu0 0.0
    %202 = vmatpush1.xpose.msra.mxu0 0.0
    %203 = vmatprep.subr.mxu0 0.0
    %204 = vmatpush1.xpose.msra.mxu0 0.0
    %205 = vmatprep.subr.mxu0 0.0
    %206 = vmatpush1.xpose.msra.mxu0 0.0
    %207 = vmatprep.subr.mxu0 0.0
    %208 = vmatpush1.xpose.msra.mxu0 0.0
    %209 = vmatprep.subr.mxu0 0.0
    %210 = vmatpush1.xpose.msra.mxu0 0.0
    %211 = vmatprep.mubr.f32.mxu0 0.0
    %212 = vmatmul.mubr.f32.gmra.mrb[0].mxu0 %v143
    %v213 = vpop.f32.mrb[0].mxu0
    %v214 = vadd.f32 0.0, %v213
    %v215 = vpop.f32.mrb[0].mxu0
    %216 = vdwg.mxu0
    %v217 = vmul.f32 %v214, 20.0
    %s218 = smul.u32 0, 8
    %s219 = scalar_lea.vmem [#allocation2], %s218
    %v220 = vld [vmem:[%s219] sm:$0xff]
    %s221 = sadd.s32 %s218, 8
    %s222 = scalar_lea.vmem [#allocation2], %s221
    %v223 = vld [vmem:[%s222] sm:$0xff]
    %s224 = sadd.s32 %s218, 16
    %s225 = scalar_lea.vmem [#allocation2], %s224
    %v226 = vld [vmem:[%s225] sm:$0xff]
    %v227 = vmul.f32 %v143, %v220
    %228 = vadd.xlane.f32.xlu0 %v227
    %v229 = vpop.xlane.xlu0 %228
    %v230 = vmul.f32 %v229, 20.0
    %v231 = vmul.f32 %v143, %v223
    %232 = vadd.xlane.f32.xlu0 %v231
    %v233 = vpop.xlane.xlu0 %232
    %v234 = vmul.f32 %v233, 20.0
    %v235 = vmul.f32 %v143, %v226
    %236 = vadd.xlane.f32.xlu0 %v235
    %v237 = vpop.xlane.xlu0 %236
    %v238 = vmul.f32 %v237, 20.0
    %vm239 = vcmask 195584
    %v240 = vsel %vm239, %v217, -inf
    %241 = vmax.xlane.f32.xlu0 %v240
    %v242 = vpop.xlane.xlu0 %241
    %v243 = vsub.f32 %v217, %v242
    %v244 = vmul.f32 %v243, 1.442695
    %v245 = vpow.pop %v244
    %vm246 = vcmask 64512
    %v247 = vsel %vm246, %v245, 0.0
    %248 = vadd.xlane.f32.xlu0 %v247
    %v249 = vpop.xlane.xlu0 %248
    %251 = vrot.lane.b32.xlu0 %v245, 120
    %v252 = vpop.permute.xlu0 %251
    %v254 = vsel %vm246, %v252, 0.0
    %255 = vadd.xlane.f32.xlu0 %v254
    %v256 = vpop.xlane.xlu0 %255
    %257 = vrot.lane.b32.xlu0 %v245, 112
    %v258 = vpop.permute.xlu0 %257
    %v260 = vsel %vm246, %v258, 0.0
    %261 = vadd.xlane.f32.xlu0 %v260
    %v262 = vpop.xlane.xlu0 %261
    %v263 = vsub.f32 %v230, %v242
    %v264 = vmul.f32 %v263, 1.442695
    %v265 = vpow.pop %v264
    %v266 = vsub.f32 %v234, %v242
    %v267 = vmul.f32 %v266, 1.442695
    %v268 = vpow.pop %v267
    %v269 = vsub.f32 %v238, %v242
    %v270 = vmul.f32 %v269, 1.442695
    %v271 = vpow.pop %v270
    %v272 = vsub.f32 %v256, %v268
    %v273 = vadd.f32 %v249, %v272
    %v274 = vsub.f32 %v262, %v271
    %v275 = vadd.f32 %v273, %v274
    %v276 = vlog2.pop %v275
    %v277 = vmul.f32 %v276, 0.6931472
    %v278 = vadd.f32 %v242, %v277
    %v279 = vsub.f32 %v249, %v265
    %v280 = vadd.f32 %v279, %v256
    %v281 = vadd.f32 %v280, %v274
    %v282 = vlog2.pop %v281
    %v283 = vmul.f32 %v282, 0.6931472
    %v284 = vadd.f32 %v242, %v283
    %v285 = vadd.f32 %v279, %v272
    %v286 = vadd.f32 %v285, %v262
    %v287 = vlog2.pop %v286
    %v288 = vmul.f32 %v287, 0.6931472
    %v289 = vadd.f32 %v242, %v288
    %v290 = vsub.f32 %v230, %v278
    %v291 = vsub.f32 %v234, %v284
    %v292 = vadd.f32 %v290, %v291
    %v293 = vsub.f32 %v238, %v289
    %v294 = vadd.f32 %v292, %v293
    %v295 = vld [vmem:[#allocation5] sm:$0x1]
    %v296 = vrot.slane %v294, 4
    %v297 = vadd.f32 %v294, %v296
    %v298 = vrot.slane %v297, 2
    %v299 = vadd.f32 %v297, %v298
    %v300 = vrot.slane %v299, 1
    %v301 = vadd.f32 %v299, %v300
    %v302 = vadd.f32 %v295, %v301
    %vm303 = vcmask 0
    %304 = vst.msk [vmem:[#allocation5] sm:$0x1] %vm303, %v302
    %v305 = vld [vmem:[#allocation6] sm:$0x1]
    %v306 = vadd.f32 %v230, %v234
    %v307 = vadd.f32 %v306, %v238
    %v308 = vrot.slane %v307, 4
    %v309 = vadd.f32 %v307, %v308
    %v310 = vrot.slane %v309, 2
    %v311 = vadd.f32 %v309, %v310
    %v312 = vrot.slane %v311, 1
    %v313 = vadd.f32 %v311, %v312
    %v314 = vadd.f32 %v305, %v313
    %315 = vst.msk [vmem:[#allocation6] sm:$0x1] %vm303, %v314
    %v316 = vld [vmem:[#allocation7] sm:$0x1]
    %v317 = vsub.f32 %v230, %v234
    %v318 = vsub.f32 5.0, %v317
    %v319 = vmax.f32 %v318, 0.0
    %v320 = vrot.slane %v319, 4
    %v321 = vadd.f32 %v319, %v320
    %v322 = vrot.slane %v321, 2
    %v323 = vadd.f32 %v321, %v322
    %v324 = vrot.slane %v323, 1
    %v325 = vadd.f32 %v323, %v324
    %v326 = vadd.f32 %v316, %v325
    %327 = vst.msk [vmem:[#allocation7] sm:$0x1] %vm303, %v326
    %v328 = vrot.slane %v240, 4
    %v329 = vmax.f32 %v240, %v328
    %v330 = vrot.slane %v329, 2
    %v331 = vmax.f32 %v329, %v330
    %v332 = vrot.slane %v331, 1
    %v333 = vmax.f32 %v331, %v332
    %v334 = vld [vmem:[#allocation3] sm:$0x1]
    %v335 = vmax.f32 %v334, %v333
    %v336 = vld [vmem:[#allocation4] sm:$0x1]
    %v337 = vsub.f32 %v334, %v335
    %v338 = vmul.f32 %v337, 1.442695
    %v339 = vpow.pop %v338
    %v340 = vmul.f32 %v336, %v339
    %v342 = vlaneseq
    %v343 = vshrl.u32 %v342, 7
    %v344 = vsub.s32 0, %v343
    %v345 = vrot.slane %v335, %v344
    %v347 = vsub.f32 %v217, %v345
    %v348 = vmul.f32 %v347, 1.442695
    %v349 = vpow.pop %v348
    %v350 = vsel %vm239, %v349, 0.0
    %v351 = vrot.slane %v350, 4
    %v352 = vadd.f32 %v350, %v351
    %v353 = vrot.slane %v352, 2
    %v354 = vadd.f32 %v352, %v353
    %v355 = vrot.slane %v354, 1
    %v356 = vadd.f32 %v354, %v355
    %v357 = vadd.f32 %v340, %v356
    %vm358 = vcmask 188416
    %359 = vst.msk [vmem:[#allocation4] sm:$0x1] %vm358, %v357
    %360 = vst.msk [vmem:[#allocation3] sm:$0x1] %vm358, %v335
    // Predicated region
    $region56: #{exclusive_nce_with_ranking_loss.1} parent=1 // pred_check
      %p361 = pneg %p27
    $region57: #{exclusive_nce_with_ranking_loss.1} parent=1 // pred_check_branch
      %363 = sbr.rel (%p361) target = $region59
    $region58: #{exclusive_nce_with_ranking_loss.1} parent=1 // pred_region
      %v364 = vld [vmem:[#allocation3] sm:$0x1]
      %v365 = vld [vmem:[#allocation4] sm:$0x1]
      %v366 = vlog2.pop %v365
      %v367 = vmul.f32 %v366, 0.6931472
      %v368 = vadd.f32 %v364, %v367
      %v369 = vsel %vm358, %v368, 0.0
      %370 = vadd.xlane.f32.xlu0 %v369
      %v371 = vpop.xlane.xlu0 %370
      %v372 = vld [vmem:[#allocation5] sm:$0x1]
      %v373 = vsub.f32 0.0, %v372
      %v374 = vrcp.pop 8.0
      %v375 = vmul.f32 %v373, %v374
      %v376 = vld [vmem:[#allocation6] sm:$0x1]
      %v377 = vsub.f32 %v376, %v371
      %v378 = vsub.f32 0.0, %v377
      %v379 = vrcp.pop 24.0
      %v380 = vmul.f32 %v378, %v379
      %v381 = vadd.f32 %v375, %v380
      %382 = vst.msk [vmem:[#allocation12] sm:$0x1] %vm303, %v381
      %v383 = vld [vmem:[#allocation7] sm:$0x1]
      %v384 = vmul.f32 %v383, %v374
      %385 = vst.msk [vmem:[#allocation13] sm:$0x1] %vm303, %v384
    $region59: #{exclusive_nce_with_ranking_loss.1} parent=1 // pred_fallthru
      _
    // Predicated region
    $region60: #{exclusive_nce_with_ranking_loss.1} parent=1 // pred_check
      _
    $region61: #{exclusive_nce_with_ranking_loss.1} parent=1 // pred_check_branch
      %387 = sbr.rel (0) target = $region63
    $region62: #{exclusive_nce_with_ranking_loss.1} parent=1 // pred_region
      %s389 = ssub.s32 16, 16
      %390 = vsyncadd [#allocation11], %s389
      %s392 = sshll.u32 [#allocation12], 4
      %s393 = int_to_ptr.vmem [resolvable:$true] %s392
      %395 = dma.vmem_to_hbm [thread:$0]  %s393, 16, %s4, [#allocation11]
    $region63: #{exclusive_nce_with_ranking_loss.1} parent=1 // pred_fallthru
      _
    // Predicated region
    $region64: #{exclusive_nce_with_ranking_loss.1} parent=1 // pred_check
      _
    $region65: #{exclusive_nce_with_ranking_loss.1} parent=1 // pred_check_branch
      %397 = sbr.rel (0) target = $region67
    $region66: #{exclusive_nce_with_ranking_loss.1} parent=1 // pred_region
      %s399 = ssub.s32 16, 16
      %400 = vsyncadd [#allocation14], %s399
      %s402 = sshll.u32 [#allocation13], 4
      %s403 = int_to_ptr.vmem [resolvable:$true] %s402
      %405 = dma.vmem_to_hbm [thread:$0]  %s403, 16, %s5, [#allocation14]
    $region67: #{exclusive_nce_with_ranking_loss.1} parent=1 // pred_fallthru
      _
    // Predicated region
    $region68: #{exclusive_nce_with_ranking_loss.1} parent=1 // pred_check
      _
    $region69: #{exclusive_nce_with_ranking_loss.1} parent=1 // pred_check_branch
      %407 = sbr.rel (0) target = $region71
    $region70: #{exclusive_nce_with_ranking_loss.1} parent=1 // pred_region
      %408 = dma.done [#allocation11], 16
    $region71: #{exclusive_nce_with_ranking_loss.1} parent=1 // pred_fallthru
      _
    // Predicated region
    $region72: #{exclusive_nce_with_ranking_loss.1} parent=1 // pred_check
      _
    $region73: #{exclusive_nce_with_ranking_loss.1} parent=1 // pred_check_branch
      %410 = sbr.rel (0) target = $region75
    $region74: #{exclusive_nce_with_ranking_loss.1} parent=1 // pred_region
      %411 = dma.done [#allocation14], 16
    $region75: #{exclusive_nce_with_ranking_loss.1} parent=1 // pred_fallthru
      _
    %412 = vsyncpa [#allocation10], 1
    %413 = vsyncpa [#allocation11], 1
    %414 = vsyncpa [#allocation14], 1
  %415 = vsyncmov [#allocation8]
  %s416 = vpop.sfrf %415
  %p417 = scmp.eq.s32.totalorder %s416, 0
  %p418 = pneg %p417
  %420 = shalt.err (%p418)
  %s421 = scalar_lea.sflag [#allocation8], 1
  %422 = vsyncmov %s421
  %s423 = vpop.sfrf %422
  %p424 = scmp.eq.s32.totalorder %s423, 0
  %p425 = pneg %p424
  %427 = shalt.err (%p425)
  %s428 = scalar_lea.sflag [#allocation8], 2
  %429 = vsyncmov %s428
  %s430 = vpop.sfrf %429
  %p431 = scmp.eq.s32.totalorder %s430, 0
  %p432 = pneg %p431
  %434 = shalt.err (%p432)

</llo_original>
